<compile_context>
chip_gen: v7x
topology: tpu7x:2x2x1
jax: 0.10.0
libtpu: 0.0.40
codegen_flags: <defaults>
</compile_context>

<pallas_src>
import functools

import jax
import jax.numpy as jnp
from jax import lax
from jax.experimental import pallas as pl
from jax.experimental.pallas import tpu as pltpu

_SMOOTH = 1e-05
_LANES = 128
_CHUNK_ROWS = 256        # inner fold chunk: 256 rows x 128 lanes (32 f32 vregs/input)
_NUM_ROW_SHARDS = 2      # leading "parallel" grid axis (both TCs on v7x)


def _round_up(x, m):
    return ((x + m - 1) // m) * m


def _dice_kernel(x_ref, t_ref, part_ref, *, block_rows, total_rows,
                 blocks_per_shard, num_blocks, needs_row_mask, needs_skip):
    c = pl.program_id(0)               # row shard (a TensorCore on v7x)
    i = pl.program_id(1)               # block within shard
    blk = c * blocks_per_shard + i     # global row-block index (may run past num_blocks)

    @pl.when(i == 0)
    def _():
        part_ref[...] = jnp.zeros_like(part_ref)

    num_chunks = block_rows // _CHUNK_ROWS

    def accumulate(mask_rows):
        def fold(v):  # (chunk, 128) -> (8, 128): pure vreg-wise VPU adds
            return v.reshape(_CHUNK_ROWS // 8, 8, _LANES).sum(axis=0)

        def body(j, carry):
            acc_xt, acc_xx, acc_tt = carry
            r0 = pl.multiple_of(j * _CHUNK_ROWS, _CHUNK_ROWS)
            x = x_ref[pl.ds(r0, _CHUNK_ROWS), :].astype(jnp.float32)
            t = t_ref[pl.ds(r0, _CHUNK_ROWS), :].astype(jnp.float32)
            if mask_rows:
                # Only the final (partial) block pays this cost.
                row_ids = lax.broadcasted_iota(jnp.int32, x.shape, 0)
                valid = (blk * block_rows + r0 + row_ids) < total_rows
                x = jnp.where(valid, x, 0.0)
                t = jnp.where(valid, t, 0.0)
            return (acc_xt + fold(x * t),
                    acc_xx + fold(x * x),
                    acc_tt + fold(t * t))

        zero = jnp.zeros((8, _LANES), jnp.float32)
        acc_xt, acc_xx, acc_tt = lax.fori_loop(
            0, num_chunks, body, (zero, zero, zero), unroll=num_chunks <= 8)
        part_ref[0, 0] += acc_xt
        part_ref[0, 1] += acc_xx
        part_ref[0, 2] += acc_tt

    if needs_row_mask or needs_skip:
        num_full = num_blocks - 1 if needs_row_mask else num_blocks

        @pl.when(blk < num_full)
        def _():
            accumulate(mask_rows=False)       # steady state: no mask ops

        if needs_row_mask:
            @pl.when(blk == num_blocks - 1)
            def _():
                accumulate(mask_rows=True)    # partial trailing block only
        # blk >= num_blocks (clamped duplicate steps when nblocks % shards != 0)
        # contribute nothing.
    else:
        accumulate(mask_rows=False)


@functools.partial(jax.jit, static_argnames=("block_rows",))
def dice_loss_pallas(x, target, block_rows=8192):
    """Equivalent of dice_loss(input, target) with loss_type='jaccard'."""
    assert block_rows > 0 and block_rows % _CHUNK_ROWS == 0

    # Keep native dtypes on the wire (upcast happens in-kernel).
    x_flat = x.reshape(-1)
    t_flat = target.reshape(-1)
    n = x_flat.shape[0]

    rows = pl.cdiv(n, _LANES)
    # Large inputs: lane-pad only (<=127 zeros); partial last row-block is
    # masked in-kernel.  Small inputs: zero-pad rows to the chunk grain so a
    # single exact block covers them (zeros are sum-safe).
    rows_p = rows if rows >= block_rows else _round_up(max(rows, 1), _CHUNK_ROWS)
    pad = rows_p * _LANES - n
    if pad:
        x_flat = jnp.pad(x_flat, (0, pad))
        t_flat = jnp.pad(t_flat, (0, pad))
    x2d = x_flat.reshape(rows_p, _LANES)
    t2d = t_flat.reshape(rows_p, _LANES)

    br = min(block_rows, rows_p)               # always a multiple of _CHUNK_ROWS
    num_blocks = pl.cdiv(rows_p, br)
    shards = _NUM_ROW_SHARDS if num_blocks >= _NUM_ROW_SHARDS else 1
    bps = pl.cdiv(num_blocks, shards)

    needs_row_mask = (rows_p % br) != 0
    needs_skip = shards * bps != num_blocks

    def in_map(c, i):
        blk = c * bps + i
        if needs_skip:
            blk = jnp.minimum(blk, num_blocks - 1)   # clamp; kernel skips dupes
        return (blk, 0)

    kernel = functools.partial(
        _dice_kernel, block_rows=br, total_rows=rows_p,
        blocks_per_shard=bps, num_blocks=num_blocks,
        needs_row_mask=needs_row_mask, needs_skip=needs_skip)

    partials = pl.pallas_call(
        kernel,
        out_shape=jax.ShapeDtypeStruct((shards, 3, 8, _LANES), jnp.float32),
        grid_spec=pltpu.PrefetchScalarGridSpec(
            num_scalar_prefetch=0,
            grid=(shards, bps),
            in_specs=[
                pl.BlockSpec((br, _LANES), in_map),
                pl.BlockSpec((br, _LANES), in_map),
            ],
            out_specs=pl.BlockSpec((1, 3, 8, _LANES),
                                   lambda c, i: (c, 0, 0, 0)),
        ),
        compiler_params=pltpu.CompilerParams(
            dimension_semantics=("parallel", "arbitrary"),
            vmem_limit_bytes=32 * 1024 * 1024,
        ),
    )(x2d, t2d)

    # Tiny JAX epilogue: combine per-shard / per-lane partials + dice formula.
    sums = jnp.sum(partials, axis=(0, 2, 3))   # (3,) = [inse, l, r]
    dice = (2.0 * sums[0] + _SMOOTH) / (sums[1] + sums[2] + _SMOOTH)
    return 1.0 - dice


def dice_loss_ref(x, target):
    # Pure-JAX reference for verification.
    x = x.astype(jnp.float32)
    t = target.astype(jnp.float32)
    inse = jnp.sum(x * t)
    l = jnp.sum(x * x)
    r = jnp.sum(t * t)
    dice = (2.0 * inse + _SMOOTH) / (l + r + _SMOOTH)
    return 1.0 - dice


if __name__ == "__main__":
    key = jax.random.PRNGKey(0)

    # Primary small NCHW case (single block, single shard).
    k1, k2, k3, k4, k5, k6 = jax.random.split(key, 6)
    x = jax.nn.sigmoid(jax.random.normal(k1, (2, 4, 16, 16), dtype=jnp.float32))
    target = (jax.random.uniform(k2, (2, 4, 16, 16)) > 0.5).astype(jnp.float32)
    loss = jax.block_until_ready(dice_loss_pallas(x, target))
    ref = dice_loss_ref(x, target)
    assert jnp.allclose(loss, ref, rtol=1e-5, atol=1e-6), (loss, ref)

    # Exercise the 2-shard + masked-final-block path.
    x2 = jax.nn.sigmoid(jax.random.normal(k3, (2, 3, 64, 173), dtype=jnp.float32))
    t2 = (jax.random.uniform(k4, (2, 3, 64, 173)) > 0.5).astype(jnp.float32)
    loss2 = jax.block_until_ready(dice_loss_pallas(x2, t2, block_rows=512))
    ref2 = dice_loss_ref(x2, t2)
    assert jnp.allclose(loss2, ref2, rtol=1e-5, atol=1e-6), (loss2, ref2)

    # Exercise the odd-block-count (clamped/skipped step) path + bf16 target.
    x3 = jax.nn.sigmoid(jax.random.normal(k5, (2, 4, 75, 128), dtype=jnp.float32))
    t3 = (jax.random.uniform(k6, (2, 4, 75, 128)) > 0.5).astype(jnp.bfloat16)
    loss3 = jax.block_until_ready(dice_loss_pallas(x3, t3, block_rows=256))
    ref3 = dice_loss_ref(x3, t3)
    assert jnp.allclose(loss3, ref3, rtol=1e-5, atol=1e-6), (loss3, ref3)

    print("KERNEL_OK")
</pallas_src>

<mosaic_0001>
module attributes {stable_mosaic.version = 11 : i64} {
  func.func @_dice_kernel(%arg0: i32, %arg1: i32, %arg2: memref<256x128xf32, #tpu.memory_space<vmem>>, %arg3: memref<256x128xf32, #tpu.memory_space<vmem>>, %arg4: memref<1x3x8x128xf32, #tpu.memory_space<vmem>>) attributes {dimension_semantics = [#tpu.dimension_semantics<parallel>, #tpu.dimension_semantics<arbitrary>], iteration_bounds = array<i64: 1, 1>, scalar_prefetch = 0 : i64, scratch_operands = 0 : i64, tpu.core_type = #tpu.core_type<tc>, window_params = [{transform_indices = @transform_0, window_bounds = array<i64: 256, 128>}, {transform_indices = @transform_1, window_bounds = array<i64: 256, 128>}, {transform_indices = @transform_2, window_bounds = array<i64: 1, 3, 8, 128>}]} {
    %c0_i32 = arith.constant 0 : i32
    %0 = arith.cmpi eq, %arg1, %c0_i32 : i32
    %1 = arith.extui %0 : i1 to i32
    %c0_i32_0 = arith.constant 0 : i32
    %2 = arith.cmpi ne, %1, %c0_i32_0 : i32
    scf.if %2 {
      %cst_28 = arith.constant 0.000000e+00 : f32
      %40 = vector.broadcast %cst_28 : f32 to vector<1x3x8x128xf32>
      %c0_29 = arith.constant 0 : index
      %c0_30 = arith.constant 0 : index
      %c0_31 = arith.constant 0 : index
      %c0_32 = arith.constant 0 : index
      %41 = vector.load %arg4[%c0_29, %c0_30, %c0_31, %c0_32] : memref<1x3x8x128xf32, #tpu.memory_space<vmem>>, vector<1x3x8x128xf32>
      tpu.vector_store %arg4[%c0_29, %c0_30, %c0_31, %c0_32], %40 {strides = array<i32>} : memref<1x3x8x128xf32, #tpu.memory_space<vmem>>, vector<1x3x8x128xf32>,
    } else {
    }
    %cst = arith.constant 0.000000e+00 : f32
    %3 = vector.broadcast %cst : f32 to vector<8x128xf32>
    %c0_i32_1 = arith.constant 0 : i32
    %c256_i32 = arith.constant 256 : i32
    %4 = arith.muli %c0_i32_1, %c256_i32 : i32
    %5 = tpu.assume_multiple %4, 256 : i32
    %6 = arith.index_cast %5 : i32 to index
    %c0 = arith.constant 0 : index
    %7 = vector.load %arg2[%6, %c0] : memref<256x128xf32, #tpu.memory_space<vmem>>, vector<256x128xf32>
    %8 = arith.index_cast %5 : i32 to index
    %c0_2 = arith.constant 0 : index
    %9 = vector.load %arg3[%8, %c0_2] : memref<256x128xf32, #tpu.memory_space<vmem>>, vector<256x128xf32>
    %10 = arith.mulf %7, %9 : vector<256x128xf32>
    %11 = vector.shape_cast %10 : vector<256x128xf32> to vector<32x8x128xf32>
    %cst_3 = arith.constant dense<0.000000e+00> : vector<8x128xf32>
    %12 = vector.multi_reduction <add>, %11, %cst_3 [0] : vector<32x8x128xf32> to vector<8x128xf32>
    %13 = arith.addf %3, %12 : vector<8x128xf32>
    %14 = arith.mulf %7, %7 : vector<256x128xf32>
    %15 = vector.shape_cast %14 : vector<256x128xf32> to vector<32x8x128xf32>
    %cst_4 = arith.constant dense<0.000000e+00> : vector<8x128xf32>
    %16 = vector.multi_reduction <add>, %15, %cst_4 [0] : vector<32x8x128xf32> to vector<8x128xf32>
    %17 = arith.addf %3, %16 : vector<8x128xf32>
    %18 = arith.mulf %9, %9 : vector<256x128xf32>
    %19 = vector.shape_cast %18 : vector<256x128xf32> to vector<32x8x128xf32>
    %cst_5 = arith.constant dense<0.000000e+00> : vector<8x128xf32>
    %20 = vector.multi_reduction <add>, %19, %cst_5 [0] : vector<32x8x128xf32> to vector<8x128xf32>
    %21 = arith.addf %3, %20 : vector<8x128xf32>
    %c1_i32 = arith.constant 1 : i32
    %c0_6 = arith.constant 0 : index
    %c0_7 = arith.constant 0 : index
    %c0_8 = arith.constant 0 : index
    %c0_9 = arith.constant 0 : index
    %22 = vector.load %arg4[%c0_6, %c0_7, %c0_8, %c0_9] : memref<1x3x8x128xf32, #tpu.memory_space<vmem>>, vector<1x1x8x128xf32>
    %23 = vector.shape_cast %22 : vector<1x1x8x128xf32> to vector<8x128xf32>
    %24 = arith.addf %23, %13 : vector<8x128xf32>
    %c0_10 = arith.constant 0 : index
    %c0_11 = arith.constant 0 : index
    %c0_12 = arith.constant 0 : index
    %c0_13 = arith.constant 0 : index
    %25 = vector.load %arg4[%c0_10, %c0_11, %c0_12, %c0_13] : memref<1x3x8x128xf32, #tpu.memory_space<vmem>>, vector<1x1x8x128xf32>
    %26 = vector.shape_cast %25 : vector<1x1x8x128xf32> to vector<8x128xf32>
    %27 = vector.shape_cast %24 : vector<8x128xf32> to vector<1x1x8x128xf32>
    tpu.vector_store %arg4[%c0_10, %c0_11, %c0_12, %c0_13], %27 {strides = array<i32>} : memref<1x3x8x128xf32, #tpu.memory_space<vmem>>, vector<1x1x8x128xf32>,
    %c0_14 = arith.constant 0 : index
    %c1 = arith.constant 1 : index
    %c0_15 = arith.constant 0 : index
    %c0_16 = arith.constant 0 : index
    %28 = vector.load %arg4[%c0_14, %c1, %c0_15, %c0_16] : memref<1x3x8x128xf32, #tpu.memory_space<vmem>>, vector<1x1x8x128xf32>
    %29 = vector.shape_cast %28 : vector<1x1x8x128xf32> to vector<8x128xf32>
    %30 = arith.addf %29, %17 : vector<8x128xf32>
    %c0_17 = arith.constant 0 : index
    %c1_18 = arith.constant 1 : index
    %c0_19 = arith.constant 0 : index
    %c0_20 = arith.constant 0 : index
    %31 = vector.load %arg4[%c0_17, %c1_18, %c0_19, %c0_20] : memref<1x3x8x128xf32, #tpu.memory_space<vmem>>, vector<1x1x8x128xf32>
    %32 = vector.shape_cast %31 : vector<1x1x8x128xf32> to vector<8x128xf32>
    %33 = vector.shape_cast %30 : vector<8x128xf32> to vector<1x1x8x128xf32>
    tpu.vector_store %arg4[%c0_17, %c1_18, %c0_19, %c0_20], %33 {strides = array<i32>} : memref<1x3x8x128xf32, #tpu.memory_space<vmem>>, vector<1x1x8x128xf32>,
    %c0_21 = arith.constant 0 : index
    %c2 = arith.constant 2 : index
    %c0_22 = arith.constant 0 : index
    %c0_23 = arith.constant 0 : index
    %34 = vector.load %arg4[%c0_21, %c2, %c0_22, %c0_23] : memref<1x3x8x128xf32, #tpu.memory_space<vmem>>, vector<1x1x8x128xf32>
    %35 = vector.shape_cast %34 : vector<1x1x8x128xf32> to vector<8x128xf32>
    %36 = arith.addf %35, %21 : vector<8x128xf32>
    %c0_24 = arith.constant 0 : index
    %c2_25 = arith.constant 2 : index
    %c0_26 = arith.constant 0 : index
    %c0_27 = arith.constant 0 : index
    %37 = vector.load %arg4[%c0_24, %c2_25, %c0_26, %c0_27] : memref<1x3x8x128xf32, #tpu.memory_space<vmem>>, vector<1x1x8x128xf32>
    %38 = vector.shape_cast %37 : vector<1x1x8x128xf32> to vector<8x128xf32>
    %39 = vector.shape_cast %36 : vector<8x128xf32> to vector<1x1x8x128xf32>
    tpu.vector_store %arg4[%c0_24, %c2_25, %c0_26, %c0_27], %39 {strides = array<i32>} : memref<1x3x8x128xf32, #tpu.memory_space<vmem>>, vector<1x1x8x128xf32>,
    return
  }
  func.func @transform_0(%arg0: i32, %arg1: i32) -> (i32, i32) {
    %c1_i32 = arith.constant 1 : i32
    %0 = arith.muli %arg0, %c1_i32 : i32
    %1 = arith.addi %0, %arg1 : i32
    %c0_i32 = arith.constant 0 : i32
    %c0_i32_0 = arith.constant 0 : i32
    return %1, %c0_i32 : i32, i32
  }
  func.func @transform_1(%arg0: i32, %arg1: i32) -> (i32, i32) {
    %c1_i32 = arith.constant 1 : i32
    %0 = arith.muli %arg0, %c1_i32 : i32
    %1 = arith.addi %0, %arg1 : i32
    %c0_i32 = arith.constant 0 : i32
    %c0_i32_0 = arith.constant 0 : i32
    return %1, %c0_i32 : i32, i32
  }
  func.func @transform_2(%arg0: i32, %arg1: i32) -> (i32, i32, i32, i32) {
    %c0_i32 = arith.constant 0 : i32
    %c0_i32_0 = arith.constant 0 : i32
    %c0_i32_1 = arith.constant 0 : i32
    %c0_i32_2 = arith.constant 0 : i32
    return %arg0, %c0_i32, %c0_i32_0, %c0_i32_1 : i32, i32, i32, i32
  }
}

</mosaic_0001>

<llo_original>
// kernel: dice_loss_pallas.1
$region0: #{dice_loss_pallas.1}
  #allocation0 [shape = 'u32[]', space=smem, size = 0x4, offset = 0x4, fixed_abs, tag = 'smem constant byte address 0x4 - core index']
  #allocation1 [shape = 'u32[144,128]{1,0:T(1,128)}', space=vmem, size = 0x12000, scoped, tag = 'internal scratch']
  %s0 = inlined_call_operand.vmem [shape: f32[256,128], index: 0, kind: input, shape index: {}]
  %s1 = inlined_call_operand.vmem [shape: f32[256,128], index: 1, kind: input, shape index: {}]
  %s2 = inlined_call_operand.vmem [shape: f32[1,3,8,128], index: 2, kind: output, shape index: {}]
  %s3 = sld [smem:[#allocation0]]
  $region22: #{dice_loss_pallas.1} parent=0
    _
  %s5 = ssub.s32 1, %s3
  %s6 = scalar_select 0, %s5, %s3
  // Predicated region
  $region2: #{dice_loss_pallas.1} parent=0 // pred_check
    _
  $region3: #{dice_loss_pallas.1} parent=0 // pred_check_branch
    %8 = sbr.rel (0) target = $region5
  $region4: #{dice_loss_pallas.1} parent=0 // pred_region
    %s9 = sadd.s32 0, 0
    %s10 = smul.u32 32, %s9
    %p11 = scmp.lt.s32.totalorder %s10, 31
    %s12 = scalar_select %p11, %s10, 31
    %s13 = smul.addr %s12, 8
    %s14 = scalar_lea.vmem %s0, %s13
    %s15 = sadd.s32 0, 0
    %s16 = smul.u32 32, %s15
  $region5: #{dice_loss_pallas.1} parent=0 // pred_fallthru
    _
  // Predicated region
  $region6: #{dice_loss_pallas.1} parent=0 // pred_check
    _
  $region7: #{dice_loss_pallas.1} parent=0 // pred_check_branch
    %18 = sbr.rel (0) target = $region9
  $region8: #{dice_loss_pallas.1} parent=0 // pred_region
    %s19 = sadd.s32 0, 0
    %s20 = smul.u32 32, %s19
    %p21 = scmp.lt.s32.totalorder %s20, 31
    %s22 = scalar_select %p21, %s20, 31
    %s23 = smul.addr %s22, 8
    %s24 = scalar_lea.vmem %s1, %s23
    %s25 = sadd.s32 0, 0
    %s26 = smul.u32 32, %s25
  $region9: #{dice_loss_pallas.1} parent=0 // pred_fallthru
    _
  %s27 = sadd.s32 0, 0
  %s28 = smul.u32 32, %s27
  %p29 = scmp.lt.s32.totalorder %s28, 31
  %s30 = scalar_select %p29, %s28, 31
  %s31 = smul.addr %s30, 8
  %s32 = scalar_lea.vmem %s0, %s31
  %s33 = sadd.s32 0, 0
  %s34 = smul.u32 32, %s33
  %p35 = scmp.lt.s32.totalorder %s34, 31
  %s36 = scalar_select %p35, %s34, 31
  %s37 = smul.addr %s36, 8
  %s38 = scalar_lea.vmem %s1, %s37
  %s39 = sadd.s32 0, 0
  %s40 = smul.u32 32, %s39
  %p41 = scmp.lt.s32.totalorder %s40, 31
  %s42 = scalar_select %p41, %s40, 31
  %s43 = smul.addr %s42, 8
  %s44 = scalar_lea.vmem %s0, %s43
  %s45 = sadd.s32 0, 0
  %s46 = smul.u32 32, %s45
  %s47 = sadd.s32 0, 0
  %s48 = smul.u32 32, %s47
  %p49 = scmp.lt.s32.totalorder %s48, 31
  %s50 = scalar_select %p49, %s48, 31
  %s51 = smul.addr %s50, 8
  %s52 = scalar_lea.vmem %s1, %s51
  %s53 = sadd.s32 0, 0
  %s54 = smul.u32 32, %s53
  %p55 = scmp.eq.s32.totalorder 0, 0
  // Predicated region
  $region10: #{dice_loss_pallas.1} parent=0 // pred_check
    %p56 = pneg %p55
  $region11: #{dice_loss_pallas.1} parent=0 // pred_check_branch
    %58 = sbr.rel (%p56) target = $region13
  $region12: #{dice_loss_pallas.1} parent=0 // pred_region
    %59 = vst [vmem:[%s2] sm:$0xff] 0.0
    %60 = vst [vmem:[%s2 + $0x8] sm:$0xff] 0.0
    %61 = vst [vmem:[%s2 + $0x10] sm:$0xff] 0.0
  $region13: #{dice_loss_pallas.1} parent=0 // pred_fallthru
    _
  %v62 = vld [vmem:[%s44] sm:$0xff]
  %v63 = vld [vmem:[%s44 + $0x8] sm:$0xff]
  %v64 = vld [vmem:[%s44 + $0x10] sm:$0xff]
  %v65 = vld [vmem:[%s44 + $0x18] sm:$0xff]
  %v66 = vld [vmem:[%s44 + $0x20] sm:$0xff]
  %v67 = vld [vmem:[%s44 + $0x28] sm:$0xff]
  %v68 = vld [vmem:[%s44 + $0x30] sm:$0xff]
  %v69 = vld [vmem:[%s44 + $0x38] sm:$0xff]
  %v70 = vld [vmem:[%s44 + $0x40] sm:$0xff]
  %v71 = vld [vmem:[%s44 + $0x48] sm:$0xff]
  %v72 = vld [vmem:[%s44 + $0x50] sm:$0xff]
  %v73 = vld [vmem:[%s44 + $0x58] sm:$0xff]
  %v74 = vld [vmem:[%s44 + $0x60] sm:$0xff]
  %v75 = vld [vmem:[%s44 + $0x68] sm:$0xff]
  %v76 = vld [vmem:[%s44 + $0x70] sm:$0xff]
  %v77 = vld [vmem:[%s44 + $0x78] sm:$0xff]
  %v78 = vld [vmem:[%s44 + $0x80] sm:$0xff]
  %v79 = vld [vmem:[%s44 + $0x88] sm:$0xff]
  %v80 = vld [vmem:[%s44 + $0x90] sm:$0xff]
  %v81 = vld [vmem:[%s44 + $0x98] sm:$0xff]
  %v82 = vld [vmem:[%s44 + $0xa0] sm:$0xff]
  %v83 = vld [vmem:[%s44 + $0xa8] sm:$0xff]
  %v84 = vld [vmem:[%s44 + $0xb0] sm:$0xff]
  %v85 = vld [vmem:[%s44 + $0xb8] sm:$0xff]
  %v86 = vld [vmem:[%s44 + $0xc0] sm:$0xff]
  %v87 = vld [vmem:[%s44 + $0xc8] sm:$0xff]
  %v88 = vld [vmem:[%s44 + $0xd0] sm:$0xff]
  %v89 = vld [vmem:[%s44 + $0xd8] sm:$0xff]
  %v90 = vld [vmem:[%s44 + $0xe0] sm:$0xff]
  %v91 = vld [vmem:[%s44 + $0xe8] sm:$0xff]
  %v92 = vld [vmem:[%s44 + $0xf0] sm:$0xff]
  %v93 = vld [vmem:[%s44 + $0xf8] sm:$0xff]
  %v94 = vld [vmem:[%s52] sm:$0xff]
  %v95 = vld [vmem:[%s52 + $0x8] sm:$0xff]
  %v96 = vld [vmem:[%s52 + $0x10] sm:$0xff]
  %v97 = vld [vmem:[%s52 + $0x18] sm:$0xff]
  %v98 = vld [vmem:[%s52 + $0x20] sm:$0xff]
  %v99 = vld [vmem:[%s52 + $0x28] sm:$0xff]
  %v100 = vld [vmem:[%s52 + $0x30] sm:$0xff]
  %v101 = vld [vmem:[%s52 + $0x38] sm:$0xff]
  %v102 = vld [vmem:[%s52 + $0x40] sm:$0xff]
  %v103 = vld [vmem:[%s52 + $0x48] sm:$0xff]
  %v104 = vld [vmem:[%s52 + $0x50] sm:$0xff]
  %v105 = vld [vmem:[%s52 + $0x58] sm:$0xff]
  %v106 = vld [vmem:[%s52 + $0x60] sm:$0xff]
  %v107 = vld [vmem:[%s52 + $0x68] sm:$0xff]
  %v108 = vld [vmem:[%s52 + $0x70] sm:$0xff]
  %v109 = vld [vmem:[%s52 + $0x78] sm:$0xff]
  %v110 = vld [vmem:[%s52 + $0x80] sm:$0xff]
  %v111 = vld [vmem:[%s52 + $0x88] sm:$0xff]
  %v112 = vld [vmem:[%s52 + $0x90] sm:$0xff]
  %v113 = vld [vmem:[%s52 + $0x98] sm:$0xff]
  %v114 = vld [vmem:[%s52 + $0xa0] sm:$0xff]
  %v115 = vld [vmem:[%s52 + $0xa8] sm:$0xff]
  %v116 = vld [vmem:[%s52 + $0xb0] sm:$0xff]
  %v117 = vld [vmem:[%s52 + $0xb8] sm:$0xff]
  %v118 = vld [vmem:[%s52 + $0xc0] sm:$0xff]
  %v119 = vld [vmem:[%s52 + $0xc8] sm:$0xff]
  %v120 = vld [vmem:[%s52 + $0xd0] sm:$0xff]
  %v121 = vld [vmem:[%s52 + $0xd8] sm:$0xff]
  %v122 = vld [vmem:[%s52 + $0xe0] sm:$0xff]
  %v123 = vld [vmem:[%s52 + $0xe8] sm:$0xff]
  %v124 = vld [vmem:[%s52 + $0xf0] sm:$0xff]
  %v125 = vld [vmem:[%s52 + $0xf8] sm:$0xff]
  %v126 = vmul.f32 %v62, %v94
  %v127 = vmul.f32 %v63, %v95
  %v128 = vmul.f32 %v64, %v96
  %v129 = vmul.f32 %v65, %v97
  %v130 = vmul.f32 %v66, %v98
  %v131 = vmul.f32 %v67, %v99
  %v132 = vmul.f32 %v68, %v100
  %v133 = vmul.f32 %v69, %v101
  %v134 = vmul.f32 %v70, %v102
  %v135 = vmul.f32 %v71, %v103
  %v136 = vmul.f32 %v72, %v104
  %v137 = vmul.f32 %v73, %v105
  %v138 = vmul.f32 %v74, %v106
  %v139 = vmul.f32 %v75, %v107
  %v140 = vmul.f32 %v76, %v108
  %v141 = vmul.f32 %v77, %v109
  %v142 = vmul.f32 %v78, %v110
  %v143 = vmul.f32 %v79, %v111
  %v144 = vmul.f32 %v80, %v112
  %v145 = vmul.f32 %v81, %v113
  %v146 = vmul.f32 %v82, %v114
  %v147 = vmul.f32 %v83, %v115
  %v148 = vmul.f32 %v84, %v116
  %v149 = vmul.f32 %v85, %v117
  %v150 = vmul.f32 %v86, %v118
  %v151 = vmul.f32 %v87, %v119
  %v152 = vmul.f32 %v88, %v120
  %v153 = vmul.f32 %v89, %v121
  %v154 = vmul.f32 %v90, %v122
  %v155 = vmul.f32 %v91, %v123
  %v156 = vmul.f32 %v92, %v124
  %v157 = vmul.f32 %v93, %v125
  %v158 = vadd.f32 %v126, %v127
  %v159 = vadd.f32 %v158, %v128
  %v160 = vadd.f32 %v159, %v129
  %v161 = vadd.f32 %v160, %v130
  %v162 = vadd.f32 %v161, %v131
  %v163 = vadd.f32 %v162, %v132
  %v164 = vadd.f32 %v163, %v133
  %v165 = vadd.f32 %v164, %v134
  %v166 = vadd.f32 %v165, %v135
  %v167 = vadd.f32 %v166, %v136
  %v168 = vadd.f32 %v167, %v137
  %v169 = vadd.f32 %v168, %v138
  %v170 = vadd.f32 %v169, %v139
  %v171 = vadd.f32 %v170, %v140
  %v172 = vadd.f32 %v171, %v141
  %v173 = vadd.f32 %v172, %v142
  %v174 = vadd.f32 %v173, %v143
  %v175 = vadd.f32 %v174, %v144
  %v176 = vadd.f32 %v175, %v145
  %v177 = vadd.f32 %v176, %v146
  %v178 = vadd.f32 %v177, %v147
  %v179 = vadd.f32 %v178, %v148
  %v180 = vadd.f32 %v179, %v149
  %v181 = vadd.f32 %v180, %v150
  %v182 = vadd.f32 %v181, %v151
  %v183 = vadd.f32 %v182, %v152
  %v184 = vadd.f32 %v183, %v153
  %v185 = vadd.f32 %v184, %v154
  %v186 = vadd.f32 %v185, %v155
  %v187 = vadd.f32 %v186, %v156
  %v188 = vadd.f32 %v187, %v157
  %v189 = vadd.f32 %v188, 0.0
  %v190 = vmul.f32 %v62, %v62
  %v191 = vmul.f32 %v63, %v63
  %v192 = vmul.f32 %v64, %v64
  %v193 = vmul.f32 %v65, %v65
  %v194 = vmul.f32 %v66, %v66
  %v195 = vmul.f32 %v67, %v67
  %v196 = vmul.f32 %v68, %v68
  %v197 = vmul.f32 %v69, %v69
  %v198 = vmul.f32 %v70, %v70
  %v199 = vmul.f32 %v71, %v71
  %v200 = vmul.f32 %v72, %v72
  %v201 = vmul.f32 %v73, %v73
  %v202 = vmul.f32 %v74, %v74
  %v203 = vmul.f32 %v75, %v75
  %v204 = vmul.f32 %v76, %v76
  %v205 = vmul.f32 %v77, %v77
  %v206 = vmul.f32 %v78, %v78
  %v207 = vmul.f32 %v79, %v79
  %v208 = vmul.f32 %v80, %v80
  %v209 = vmul.f32 %v81, %v81
  %v210 = vmul.f32 %v82, %v82
  %v211 = vmul.f32 %v83, %v83
  %v212 = vmul.f32 %v84, %v84
  %v213 = vmul.f32 %v85, %v85
  %v214 = vmul.f32 %v86, %v86
  %v215 = vmul.f32 %v87, %v87
  %v216 = vmul.f32 %v88, %v88
  %v217 = vmul.f32 %v89, %v89
  %v218 = vmul.f32 %v90, %v90
  %v219 = vmul.f32 %v91, %v91
  %v220 = vmul.f32 %v92, %v92
  %v221 = vmul.f32 %v93, %v93
  %v222 = vadd.f32 %v190, %v191
  %v223 = vadd.f32 %v222, %v192
  %v224 = vadd.f32 %v223, %v193
  %v225 = vadd.f32 %v224, %v194
  %v226 = vadd.f32 %v225, %v195
  %v227 = vadd.f32 %v226, %v196
  %v228 = vadd.f32 %v227, %v197
  %v229 = vadd.f32 %v228, %v198
  %v230 = vadd.f32 %v229, %v199
  %v231 = vadd.f32 %v230, %v200
  %v232 = vadd.f32 %v231, %v201
  %v233 = vadd.f32 %v232, %v202
  %v234 = vadd.f32 %v233, %v203
  %v235 = vadd.f32 %v234, %v204
  %v236 = vadd.f32 %v235, %v205
  %v237 = vadd.f32 %v236, %v206
  %v238 = vadd.f32 %v237, %v207
  %v239 = vadd.f32 %v238, %v208
  %v240 = vadd.f32 %v239, %v209
  %v241 = vadd.f32 %v240, %v210
  %v242 = vadd.f32 %v241, %v211
  %v243 = vadd.f32 %v242, %v212
  %v244 = vadd.f32 %v243, %v213
  %v245 = vadd.f32 %v244, %v214
  %v246 = vadd.f32 %v245, %v215
  %v247 = vadd.f32 %v246, %v216
  %v248 = vadd.f32 %v247, %v217
  %v249 = vadd.f32 %v248, %v218
  %v250 = vadd.f32 %v249, %v219
  %v251 = vadd.f32 %v250, %v220
  %v252 = vadd.f32 %v251, %v221
  %v253 = vadd.f32 %v252, 0.0
  %v254 = vmul.f32 %v94, %v94
  %v255 = vmul.f32 %v95, %v95
  %v256 = vmul.f32 %v96, %v96
  %v257 = vmul.f32 %v97, %v97
  %v258 = vmul.f32 %v98, %v98
  %v259 = vmul.f32 %v99, %v99
  %v260 = vmul.f32 %v100, %v100
  %v261 = vmul.f32 %v101, %v101
  %v262 = vmul.f32 %v102, %v102
  %v263 = vmul.f32 %v103, %v103
  %v264 = vmul.f32 %v104, %v104
  %v265 = vmul.f32 %v105, %v105
  %v266 = vmul.f32 %v106, %v106
  %v267 = vmul.f32 %v107, %v107
  %v268 = vmul.f32 %v108, %v108
  %v269 = vmul.f32 %v109, %v109
  %v270 = vmul.f32 %v110, %v110
  %v271 = vmul.f32 %v111, %v111
  %v272 = vmul.f32 %v112, %v112
  %v273 = vmul.f32 %v113, %v113
  %v274 = vmul.f32 %v114, %v114
  %v275 = vmul.f32 %v115, %v115
  %v276 = vmul.f32 %v116, %v116
  %v277 = vmul.f32 %v117, %v117
  %v278 = vmul.f32 %v118, %v118
  %v279 = vmul.f32 %v119, %v119
  %v280 = vmul.f32 %v120, %v120
  %v281 = vmul.f32 %v121, %v121
  %v282 = vmul.f32 %v122, %v122
  %v283 = vmul.f32 %v123, %v123
  %v284 = vmul.f32 %v124, %v124
  %v285 = vmul.f32 %v125, %v125
  %v286 = vadd.f32 %v254, %v255
  %v287 = vadd.f32 %v286, %v256
  %v288 = vadd.f32 %v287, %v257
  %v289 = vadd.f32 %v288, %v258
  %v290 = vadd.f32 %v289, %v259
  %v291 = vadd.f32 %v290, %v260
  %v292 = vadd.f32 %v291, %v261
  %v293 = vadd.f32 %v292, %v262
  %v294 = vadd.f32 %v293, %v263
  %v295 = vadd.f32 %v294, %v264
  %v296 = vadd.f32 %v295, %v265
  %v297 = vadd.f32 %v296, %v266
  %v298 = vadd.f32 %v297, %v267
  %v299 = vadd.f32 %v298, %v268
  %v300 = vadd.f32 %v299, %v269
  %v301 = vadd.f32 %v300, %v270
  %v302 = vadd.f32 %v301, %v271
  %v303 = vadd.f32 %v302, %v272
  %v304 = vadd.f32 %v303, %v273
  %v305 = vadd.f32 %v304, %v274
  %v306 = vadd.f32 %v305, %v275
  %v307 = vadd.f32 %v306, %v276
  %v308 = vadd.f32 %v307, %v277
  %v309 = vadd.f32 %v308, %v278
  %v310 = vadd.f32 %v309, %v279
  %v311 = vadd.f32 %v310, %v280
  %v312 = vadd.f32 %v311, %v281
  %v313 = vadd.f32 %v312, %v282
  %v314 = vadd.f32 %v313, %v283
  %v315 = vadd.f32 %v314, %v284
  %v316 = vadd.f32 %v315, %v285
  %v317 = vadd.f32 %v316, 0.0
  %v318 = vld [vmem:[%s2] sm:$0xff]
  %v319 = vadd.f32 %v318, %v189
  %320 = vst [vmem:[%s2] sm:$0xff] %v319
  %s321 = scalar_lea.vmem %s2, 8
  %v322 = vld [vmem:[%s321] sm:$0xff]
  %v323 = vadd.f32 %v322, %v253
  %324 = vst [vmem:[%s321] sm:$0xff] %v323
  %s325 = scalar_lea.vmem %s2, 16
  %v326 = vld [vmem:[%s325] sm:$0xff]
  %v327 = vadd.f32 %v326, %v317
  %328 = vst [vmem:[%s325] sm:$0xff] %v327
  // Predicated region
  $region14: #{dice_loss_pallas.1} parent=0 // pred_check
    _
  $region15: #{dice_loss_pallas.1} parent=0 // pred_check_branch
    %330 = sbr.rel (0) target = $region17
  $region16: #{dice_loss_pallas.1} parent=0 // pred_region
    _
  $region17: #{dice_loss_pallas.1} parent=0 // pred_fallthru
    _
  // Predicated region
  $region18: #{dice_loss_pallas.1} parent=0 // pred_check
    _
  $region19: #{dice_loss_pallas.1} parent=0 // pred_check_branch
    %332 = sbr.rel (0) target = $region21
  $region20: #{dice_loss_pallas.1} parent=0 // pred_region
    _
  $region21: #{dice_loss_pallas.1} parent=0 // pred_fallthru
    _

</llo_original>
